<compile_context>
chip_gen: v7x
topology: tpu7x:2x2x1
jax: 0.10.0
libtpu: 0.0.40
codegen_flags: <defaults>
</compile_context>

<pallas_src>
import functools

import jax
import jax.numpy as jnp
from jax.experimental import pallas as pl
from jax.experimental.pallas import tpu as pltpu


_TARGET_TILE_BYTES = 4 * 1024 * 1024   # ~4 MiB per f32 input tile (good on
                                       # v6e/v7x; harmless on v5e)
_PALLAS_MIN_BYTES = 8 * 1024 * 1024    # below this, a fused XLA reduction wins


def _round_up(x: int, m: int) -> int:
    return ((x + m - 1) // m) * m


def _hoyer_partial_kernel(s_ref, l1_ref, sq_ref):
    """Per-(row-tile, col-segment) partial L1 / sum-of-squares.

    grid = (row_tiles, col_segments, col_tiles_inner); innermost axis is the
    reduction ("arbitrary").  Output blocks are resident across it.

    s_ref:  (tr, tc) f32 input tile.
    l1_ref, sq_ref: (tr, 128) f32 resident output blocks (leading grid dims
    squeezed by the BlockSpec).  Value is replicated across the 128 lanes so
    the store is a full, unmasked vst; the consumer reads lane 0.
    """
    ci = pl.program_id(2)

    @pl.when(ci == 0)
    def _init():
        l1_ref[...] = jnp.zeros_like(l1_ref)
        sq_ref[...] = jnp.zeros_like(sq_ref)

    blk = s_ref[...]                                      # (tr, tc) f32
    # Chained VALU adds across the tc/128 vregs + one cross-lane (XLU) reduce
    # per step; both hidden under the HBM DMA (kernel is bandwidth-bound).
    l1 = jnp.sum(jnp.abs(blk), axis=-1, keepdims=True)    # (tr, 1)
    sq = jnp.sum(blk * blk, axis=-1, keepdims=True)       # (tr, 1)
    tr = blk.shape[0]
    l1_ref[...] += jnp.broadcast_to(l1, (tr, 128))
    sq_ref[...] += jnp.broadcast_to(sq, (tr, 128))


@functools.partial(
    jax.jit,
    static_argnames=("n", "n_pad", "l_pad", "tr", "tc", "num_col_seg"))
def _hoyer_pallas(vectors, factor, *, n, n_pad, l_pad, tr, tc, num_col_seg):
    # --- Single-materialization packer (review item: 2-3x extra HBM traffic).
    # Zero padding changes neither the L1 norm nor the sum of squares.  In a
    # training loop with static S shapes, this packing can be cached.
    slab = jnp.zeros((n_pad, l_pad), jnp.float32)
    for i, v in enumerate(vectors):
        slab = jax.lax.dynamic_update_slice(
            slab, v.astype(jnp.float32)[None, :], (i, 0))

    num_row_tiles = n_pad // tr
    col_tiles_inner = (l_pad // tc) // num_col_seg

    out_sds = jax.ShapeDtypeStruct(
        (num_row_tiles, num_col_seg, tr, 128), jnp.float32)

    l1_parts, sq_parts = pl.pallas_call(
        _hoyer_partial_kernel,
        out_shape=(out_sds, out_sds),
        grid_spec=pltpu.PrefetchScalarGridSpec(
            num_scalar_prefetch=0,
            grid=(num_row_tiles, num_col_seg, col_tiles_inner),
            in_specs=[
                pl.BlockSpec(
                    (tr, tc),
                    lambda r, cs, ci: (r, cs * col_tiles_inner + ci)),
            ],
            out_specs=[
                # Same block across the reduction axis -> resident accumulator.
                pl.BlockSpec((None, None, tr, 128),
                             lambda r, cs, ci: (r, cs, 0, 0)),
                pl.BlockSpec((None, None, tr, 128),
                             lambda r, cs, ci: (r, cs, 0, 0)),
            ],
        ),
        compiler_params=pltpu.CompilerParams(
            # row tiles / column segments parallel (v7x 2-TC), reduction last.
            dimension_semantics=("parallel", "parallel", "arbitrary"),
            # ~4 MiB double-buffered input + elementwise temporaries; plenty
            # of headroom on every generation (v7x physical VMEM = 64 MiB).
            vmem_limit_bytes=48 * 1024 * 1024,
        ),
    )(slab)

    # --- Tiny finalize in plain XLA.  Padded rows are sliced off BEFORE the
    # division -> no NaN intermediates from 0/0 on padding.  A genuinely
    # all-zero valid S vector still gives NaN, matching PyTorch (0/0).
    l1_rows = jnp.sum(l1_parts[:, :, :, 0], axis=1).reshape(n_pad)[:n]
    sq_rows = jnp.sum(sq_parts[:, :, :, 0], axis=1).reshape(n_pad)[:n]
    ratio = l1_rows / jnp.sqrt(sq_rows)
    return factor * jnp.sum(ratio) / n


@jax.jit
def _hoyer_loss_jax(vectors, factor):
    """Pure-JAX path for small inputs (Pallas launch overhead dominates)."""
    total = jnp.float32(0.0)
    for v in vectors:
        v = v.astype(jnp.float32)
        total = total + jnp.sum(jnp.abs(v)) / jnp.sqrt(jnp.sum(v * v))
    return factor * total / len(vectors)


def hoyer_loss(s_vectors, factor: float = 1.0, use_pallas=None,
               target_tile_bytes: int = _TARGET_TILE_BYTES):
    """Hoyer loss over a list of 1-D singular-value vectors.

    Args:
      s_vectors: list of 1-D arrays (the `S` parameters of the model).
      factor: loss scaling factor.
      use_pallas: True/False to force a path; None = auto (pure JAX below
        ~8 MiB of padded data, Pallas kernel above).
      target_tile_bytes: per-input-tile byte budget (constant-byte tiling).

    Returns:
      scalar float32 loss (0.0 if the list is empty, matching the PyTorch code).
    """
    n = len(s_vectors)
    if n == 0:
        return jnp.float32(0.0)

    vectors = tuple(jnp.asarray(s) for s in s_vectors)
    max_len = max(int(v.shape[0]) for v in vectors)

    # --- Static tiling geometry (constant tile-byte target).
    n_pad = _round_up(n, 8)
    tr = min(n_pad, 256)                      # multiple of 8
    n_pad = _round_up(n_pad, tr)

    l_pad = _round_up(max_len, 128)
    tc = max(128, (target_tile_bytes // (4 * tr)) // 128 * 128)
    tc = min(l_pad, tc)
    total_col_tiles = -(-l_pad // tc)         # cdiv
    num_row_tiles = n_pad // tr
    # Guarantee >=2 blocks along a "parallel" axis when possible (v7x 2 TCs).
    num_col_seg = 2 if (num_row_tiles == 1 and total_col_tiles >= 2) else 1
    total_col_tiles = _round_up(total_col_tiles, num_col_seg)
    l_pad = total_col_tiles * tc

    if use_pallas is None:
        use_pallas = (n_pad * l_pad * 4) >= _PALLAS_MIN_BYTES
    if not use_pallas:
        return _hoyer_loss_jax(vectors, jnp.float32(factor))

    return _hoyer_pallas(vectors, jnp.float32(factor),
                         n=n, n_pad=n_pad, l_pad=l_pad, tr=tr, tc=tc,
                         num_col_seg=num_col_seg)


def hoyer_loss_from_named_params(named_params, factor: float = 1.0, **kw):
    """Mirror of the PyTorch forward: select params whose last name part is 'S'."""
    s_vecs = [p for name, p in named_params if name.split(".")[-1] == "S"]
    return hoyer_loss(s_vecs, factor=factor, **kw)


if __name__ == "__main__":
    key = jax.random.PRNGKey(0)

    def make_vectors(lengths, k):
        keys = jax.random.split(k, len(lengths))
        return [jax.random.uniform(kk, (l,), dtype=jnp.float32)
                for kk, l in zip(keys, lengths)]

    def ref_loss(vs, f):
        tot = jnp.float32(0.0)
        for s in vs:
            tot = tot + jnp.sum(jnp.abs(s)) / jnp.sqrt(jnp.sum(s * s))
        return jnp.float32(f) * tot / len(vs)

    factor = 0.5
    k1, k2 = jax.random.split(key)

    # Case 1: realistic small S vectors (SVD singular-value params of a few
    # layers), routed through the named-parameter wrapper, forced Pallas path.
    vs1 = make_vectors((384, 256, 192, 160, 96), k1)
    named = [(f"layer{i}.S", v) for i, v in enumerate(vs1)]
    named += [(f"layer{i}.U", jnp.zeros((4, 4))) for i in range(len(vs1))]  # ignored
    out1 = jax.block_until_ready(
        hoyer_loss_from_named_params(named, factor=factor, use_pallas=True))
    assert jnp.allclose(out1, ref_loss(vs1, factor), rtol=1e-4, atol=1e-4), \
        (out1, ref_loss(vs1, factor))

    # Case 2: longer vectors with a tiny tile target to exercise the full
    # (row, col-segment, col-inner) grid: init, accumulation across the
    # reduction axis, and the 2-segment column split.
    vs2 = make_vectors((2048, 1536, 1024, 640), k2)
    out2 = jax.block_until_ready(
        hoyer_loss(vs2, factor=factor, use_pallas=True,
                   target_tile_bytes=16 * 1024))
    assert jnp.allclose(out2, ref_loss(vs2, factor), rtol=1e-4, atol=1e-4), \
        (out2, ref_loss(vs2, factor))

    # Case 3: auto dispatch (tiny input -> fused XLA path).
    out3 = jax.block_until_ready(hoyer_loss(vs1, factor=factor))
    assert jnp.allclose(out3, ref_loss(vs1, factor), rtol=1e-4, atol=1e-4), \
        (out3, ref_loss(vs1, factor))

    # Case 4: empty model -> 0 (matches PyTorch).
    assert float(hoyer_loss([], factor=factor)) == 0.0

    print("KERNEL_OK")
</pallas_src>

<mosaic_0001>
module attributes {stable_mosaic.version = 11 : i64} {
  func.func @_hoyer_partial_kernel(%arg0: i32, %arg1: i32, %arg2: i32, %arg3: memref<8x384xf32, #tpu.memory_space<vmem>>, %arg4: memref<1x1x8x128xf32, #tpu.memory_space<vmem>>, %arg5: memref<1x1x8x128xf32, #tpu.memory_space<vmem>>) attributes {dimension_semantics = [#tpu.dimension_semantics<parallel>, #tpu.dimension_semantics<parallel>, #tpu.dimension_semantics<arbitrary>], iteration_bounds = array<i64: 1, 1, 1>, scalar_prefetch = 0 : i64, scratch_operands = 0 : i64, tpu.core_type = #tpu.core_type<tc>, window_params = [{transform_indices = @transform_0, window_bounds = array<i64: 8, 384>}, {transform_indices = @transform_1, window_bounds = array<i64: 1, 1, 8, 128>}, {transform_indices = @transform_2, window_bounds = array<i64: 1, 1, 8, 128>}]} {
    %c0_i32 = arith.constant 0 : i32
    %0 = arith.cmpi eq, %arg2, %c0_i32 : i32
    %1 = arith.extui %0 : i1 to i32
    %c0_i32_0 = arith.constant 0 : i32
    %2 = arith.cmpi ne, %1, %c0_i32_0 : i32
    scf.if %2 {
      %cst_19 = arith.constant 0.000000e+00 : f32
      %26 = vector.broadcast %cst_19 : f32 to vector<8x128xf32>
      %c0_20 = arith.constant 0 : index
      %c0_21 = arith.constant 0 : index
      %c0_22 = arith.constant 0 : index
      %c0_23 = arith.constant 0 : index
      %27 = vector.load %arg4[%c0_20, %c0_21, %c0_22, %c0_23] : memref<1x1x8x128xf32, #tpu.memory_space<vmem>>, vector<1x1x8x128xf32>
      %28 = vector.shape_cast %27 : vector<1x1x8x128xf32> to vector<8x128xf32>
      %29 = vector.shape_cast %26 : vector<8x128xf32> to vector<1x1x8x128xf32>
      tpu.vector_store %arg4[%c0_20, %c0_21, %c0_22, %c0_23], %29 {strides = array<i32>} : memref<1x1x8x128xf32, #tpu.memory_space<vmem>>, vector<1x1x8x128xf32>,
      %cst_24 = arith.constant 0.000000e+00 : f32
      %30 = vector.broadcast %cst_24 : f32 to vector<8x128xf32>
      %c0_25 = arith.constant 0 : index
      %c0_26 = arith.constant 0 : index
      %c0_27 = arith.constant 0 : index
      %c0_28 = arith.constant 0 : index
      %31 = vector.load %arg5[%c0_25, %c0_26, %c0_27, %c0_28] : memref<1x1x8x128xf32, #tpu.memory_space<vmem>>, vector<1x1x8x128xf32>
      %32 = vector.shape_cast %31 : vector<1x1x8x128xf32> to vector<8x128xf32>
      %33 = vector.shape_cast %30 : vector<8x128xf32> to vector<1x1x8x128xf32>
      tpu.vector_store %arg5[%c0_25, %c0_26, %c0_27, %c0_28], %33 {strides = array<i32>} : memref<1x1x8x128xf32, #tpu.memory_space<vmem>>, vector<1x1x8x128xf32>,
    } else {
    }
    %c0 = arith.constant 0 : index
    %c0_1 = arith.constant 0 : index
    %3 = vector.load %arg3[%c0, %c0_1] : memref<8x384xf32, #tpu.memory_space<vmem>>, vector<8x384xf32>
    %4 = math.absf %3 : vector<8x384xf32>
    %cst = arith.constant dense<0.000000e+00> : vector<8xf32>
    %5 = vector.multi_reduction <add>, %4, %cst [1] : vector<8x384xf32> to vector<8xf32>
    %6 = vector.shape_cast %5 : vector<8xf32> to vector<8x1xf32>
    %7 = arith.mulf %3, %3 : vector<8x384xf32>
    %cst_2 = arith.constant dense<0.000000e+00> : vector<8xf32>
    %8 = vector.multi_reduction <add>, %7, %cst_2 [1] : vector<8x384xf32> to vector<8xf32>
    %9 = vector.shape_cast %8 : vector<8xf32> to vector<8x1xf32>
    %c0_3 = arith.constant 0 : index
    %c0_4 = arith.constant 0 : index
    %c0_5 = arith.constant 0 : index
    %c0_6 = arith.constant 0 : index
    %10 = vector.load %arg4[%c0_3, %c0_4, %c0_5, %c0_6] : memref<1x1x8x128xf32, #tpu.memory_space<vmem>>, vector<1x1x8x128xf32>
    %11 = vector.shape_cast %10 : vector<1x1x8x128xf32> to vector<8x128xf32>
    %12 = vector.shape_cast %6 : vector<8x1xf32> to vector<8x1xf32>
    %13 = vector.broadcast %12 : vector<8x1xf32> to vector<8x128xf32>
    %14 = arith.addf %11, %13 : vector<8x128xf32>
    %c0_7 = arith.constant 0 : index
    %c0_8 = arith.constant 0 : index
    %c0_9 = arith.constant 0 : index
    %c0_10 = arith.constant 0 : index
    %15 = vector.load %arg4[%c0_7, %c0_8, %c0_9, %c0_10] : memref<1x1x8x128xf32, #tpu.memory_space<vmem>>, vector<1x1x8x128xf32>
    %16 = vector.shape_cast %15 : vector<1x1x8x128xf32> to vector<8x128xf32>
    %17 = vector.shape_cast %14 : vector<8x128xf32> to vector<1x1x8x128xf32>
    tpu.vector_store %arg4[%c0_7, %c0_8, %c0_9, %c0_10], %17 {strides = array<i32>} : memref<1x1x8x128xf32, #tpu.memory_space<vmem>>, vector<1x1x8x128xf32>,
    %c0_11 = arith.constant 0 : index
    %c0_12 = arith.constant 0 : index
    %c0_13 = arith.constant 0 : index
    %c0_14 = arith.constant 0 : index
    %18 = vector.load %arg5[%c0_11, %c0_12, %c0_13, %c0_14] : memref<1x1x8x128xf32, #tpu.memory_space<vmem>>, vector<1x1x8x128xf32>
    %19 = vector.shape_cast %18 : vector<1x1x8x128xf32> to vector<8x128xf32>
    %20 = vector.shape_cast %9 : vector<8x1xf32> to vector<8x1xf32>
    %21 = vector.broadcast %20 : vector<8x1xf32> to vector<8x128xf32>
    %22 = arith.addf %19, %21 : vector<8x128xf32>
    %c0_15 = arith.constant 0 : index
    %c0_16 = arith.constant 0 : index
    %c0_17 = arith.constant 0 : index
    %c0_18 = arith.constant 0 : index
    %23 = vector.load %arg5[%c0_15, %c0_16, %c0_17, %c0_18] : memref<1x1x8x128xf32, #tpu.memory_space<vmem>>, vector<1x1x8x128xf32>
    %24 = vector.shape_cast %23 : vector<1x1x8x128xf32> to vector<8x128xf32>
    %25 = vector.shape_cast %22 : vector<8x128xf32> to vector<1x1x8x128xf32>
    tpu.vector_store %arg5[%c0_15, %c0_16, %c0_17, %c0_18], %25 {strides = array<i32>} : memref<1x1x8x128xf32, #tpu.memory_space<vmem>>, vector<1x1x8x128xf32>,
    return
  }
  func.func @transform_0(%arg0: i32, %arg1: i32, %arg2: i32) -> (i32, i32) {
    %c1_i32 = arith.constant 1 : i32
    %0 = arith.muli %arg1, %c1_i32 : i32
    %1 = arith.addi %0, %arg2 : i32
    %c0_i32 = arith.constant 0 : i32
    return %arg0, %1 : i32, i32
  }
  func.func @transform_1(%arg0: i32, %arg1: i32, %arg2: i32) -> (i32, i32, i32, i32) {
    %c0_i32 = arith.constant 0 : i32
    %c0_i32_0 = arith.constant 0 : i32
    %c0_i32_1 = arith.constant 0 : i32
    return %arg0, %arg1, %c0_i32, %c0_i32_0 : i32, i32, i32, i32
  }
  func.func @transform_2(%arg0: i32, %arg1: i32, %arg2: i32) -> (i32, i32, i32, i32) {
    %c0_i32 = arith.constant 0 : i32
    %c0_i32_0 = arith.constant 0 : i32
    %c0_i32_1 = arith.constant 0 : i32
    return %arg0, %arg1, %c0_i32, %c0_i32_0 : i32, i32, i32, i32
  }
}

</mosaic_0001>

<llo_original>
// kernel: _hoyer_pallas.1
$region0: #{_hoyer_pallas.1}
  #allocation0 [shape = 'u32[]', space=smem, size = 0x4, offset = 0x4, fixed_abs, tag = 'smem constant byte address 0x4 - core index']
  #allocation1 [shape = 'u32[144,128]{1,0:T(1,128)}', space=vmem, size = 0x12000, scoped, tag = 'internal scratch']
  %s0 = inlined_call_operand.vmem [shape: f32[8,384], index: 0, kind: input, shape index: {}]
  %s1 = inlined_call_operand.vmem [shape: f32[1,1,8,128], index: 1, kind: output, shape index: {0}]
  %s2 = inlined_call_operand.vmem [shape: f32[1,1,8,128], index: 2, kind: output, shape index: {1}]
  %3 = xla_tuple %s1, %s2
  %s4 = sld [smem:[#allocation0]]
  $region26: #{_hoyer_pallas.1} parent=0
    _
  %s6 = ssub.s32 1, %s4
  %s7 = scalar_select 0, %s6, %s4
  // Predicated region
  $region2: #{_hoyer_pallas.1} parent=0 // pred_check
    _
  $region3: #{_hoyer_pallas.1} parent=0 // pred_check_branch
    %9 = sbr.rel (0) target = $region5
  $region4: #{_hoyer_pallas.1} parent=0 // pred_region
    %s10 = sadd.s32 0, 0
    %s11 = smul.u32 3, %s10
    %p12 = scmp.lt.s32.totalorder %s11, 2
    %s13 = scalar_select %p12, %s11, 2
    %s14 = smul.addr %s13, 8
    %s15 = scalar_lea.vmem %s0, %s14
    %s16 = sadd.s32 0, 0
    %s17 = smul.u32 3, %s16
  $region5: #{_hoyer_pallas.1} parent=0 // pred_fallthru
    _
  %s18 = sadd.s32 0, 0
  %s19 = smul.u32 3, %s18
  %p20 = scmp.lt.s32.totalorder %s19, 2
  %s21 = scalar_select %p20, %s19, 2
  %s22 = smul.addr %s21, 8
  %s23 = scalar_lea.vmem %s0, %s22
  %s24 = sadd.s32 0, 0
  %s25 = smul.u32 3, %s24
  %p26 = scmp.lt.s32.totalorder %s25, 2
  %s27 = scalar_select %p26, %s25, 2
  %s28 = smul.addr %s27, 8
  %s29 = scalar_lea.vmem %s0, %s28
  %s30 = sadd.s32 0, 0
  %s31 = smul.u32 3, %s30
  %p32 = scmp.eq.s32.totalorder 0, 0
  // Predicated region
  $region6: #{_hoyer_pallas.1} parent=0 // pred_check
    %p33 = pneg %p32
  $region7: #{_hoyer_pallas.1} parent=0 // pred_check_branch
    %35 = sbr.rel (%p33) target = $region9
  $region8: #{_hoyer_pallas.1} parent=0 // pred_region
    %36 = vst [vmem:[%s1] sm:$0xff] 0.0
    %37 = vst [vmem:[%s2] sm:$0xff] 0.0
  $region9: #{_hoyer_pallas.1} parent=0 // pred_fallthru
    _
  %v38 = vld [vmem:[%s29] sm:$0xff]
  %v39 = vld [vmem:[%s29 + $0x8] sm:$0xff]
  %v40 = vld [vmem:[%s29 + $0x10] sm:$0xff]
  %v41 = vand.u32 2147483647, %v38
  %v42 = vand.u32 2147483647, %v39
  %v43 = vand.u32 2147483647, %v40
  %v44 = vadd.f32 %v41, %v42
  %v45 = vadd.f32 %v44, %v43
  %46 = vadd.xlane.f32.xlu0 %v45
  %v47 = vpop.xlane.xlu0 %46
  %v48 = vmul.f32 %v38, %v38
  %v49 = vmul.f32 %v39, %v39
  %v50 = vmul.f32 %v40, %v40
  %v51 = vadd.f32 %v48, %v49
  %v52 = vadd.f32 %v51, %v50
  %53 = vadd.xlane.f32.xlu0 %v52
  %v54 = vpop.xlane.xlu0 %53
  %v55 = vld [vmem:[%s1] sm:$0xff]
  %v56 = vadd.f32 %v55, %v47
  %57 = vst [vmem:[%s1] sm:$0xff] %v56
  %v58 = vld [vmem:[%s2] sm:$0xff]
  %v59 = vadd.f32 %v58, %v54
  %60 = vst [vmem:[%s2] sm:$0xff] %v59
  // Predicated region
  $region10: #{_hoyer_pallas.1} parent=0 // pred_check
    _
  $region11: #{_hoyer_pallas.1} parent=0 // pred_check_branch
    %62 = sbr.rel (0) target = $region13
  $region12: #{_hoyer_pallas.1} parent=0 // pred_region
    _
  $region13: #{_hoyer_pallas.1} parent=0 // pred_fallthru
    _
  // Predicated region
  $region14: #{_hoyer_pallas.1} parent=0 // pred_check
    _
  $region15: #{_hoyer_pallas.1} parent=0 // pred_check_branch
    %64 = sbr.rel (0) target = $region17
  $region16: #{_hoyer_pallas.1} parent=0 // pred_region
    _
  $region17: #{_hoyer_pallas.1} parent=0 // pred_fallthru
    _
  // Predicated region
  $region18: #{_hoyer_pallas.1} parent=0 // pred_check
    _
  $region19: #{_hoyer_pallas.1} parent=0 // pred_check_branch
    %66 = sbr.rel (0) target = $region21
  $region20: #{_hoyer_pallas.1} parent=0 // pred_region
    _
  $region21: #{_hoyer_pallas.1} parent=0 // pred_fallthru
    _
  // Predicated region
  $region22: #{_hoyer_pallas.1} parent=0 // pred_check
    _
  $region23: #{_hoyer_pallas.1} parent=0 // pred_check_branch
    %68 = sbr.rel (0) target = $region25
  $region24: #{_hoyer_pallas.1} parent=0 // pred_region
    _
  $region25: #{_hoyer_pallas.1} parent=0 // pred_fallthru
    _

</llo_original>
